<compile_context>
chip_gen: v6e
topology: v6e:2x2x1
jax: 0.10.0
libtpu: 0.0.40
codegen_flags: <defaults>
</compile_context>

<pallas_src>
import jax
import jax.numpy as jnp
from jax.experimental import pallas as pl
from jax.experimental.pallas import tpu as pltpu

NUM_LAYERS = 6
FEATURES = 4


def _fused_affine_kernel(xt_ref, w_ref, b_ref, ot_ref):
    # xt_ref: (F_in, bt)    activations, batch on the lane axis (dense)
    # w_ref:  (F_out, F_in) fused weight (PyTorch "out, in" layout)
    # b_ref:  (F_out, 1)    fused bias (column -> broadcast over lanes)
    # ot_ref: (F_out, bt)
    bt = xt_ref.shape[1]
    xt = xt_ref[...].astype(jnp.float32)
    w = w_ref[...].astype(jnp.float32)

    # out[j, :] = b[j] + sum_k w[j, k] * xt[k, :]
    # Expressed as FEATURES broadcast multiply-adds on the VPU (no MXU).
    acc = jnp.broadcast_to(b_ref[...].astype(jnp.float32), (FEATURES, bt))
    for k in range(FEATURES):
        w_col = w[:, k:k + 1]       # (F_out, 1)  -> lane broadcast
        x_row = xt[k:k + 1, :]      # (1, bt)     -> sublane broadcast
        acc = acc + w_col * x_row   # (F_out, bt) VPU FMA

    ot_ref[...] = acc.astype(ot_ref.dtype)


def mlp_chain(x, weights, biases, *, block_b=512):
    """x: (B, 4) f32; weights: (6, 4, 4) PyTorch (out, in); biases: (6, 4).

    Computes linear6(linear5(...linear1(x)...)) exactly like MyModule.forward.
    """
    B, F = x.shape
    assert F == FEATURES
    assert block_b % 128 == 0

    # --- One-time algebraic fusion of the 6 affine layers (wrapper side) ---
    # y_i = W_i @ y_{i-1} + b_i  =>  y = W_total @ x + b_total
    w_total = weights[0]                        # (out, in)
    b_total = biases[0]                         # (out,)
    for i in range(1, NUM_LAYERS):
        w_total = weights[i] @ w_total
        b_total = weights[i] @ b_total + biases[i]
    b_col = b_total.reshape(FEATURES, 1)

    # --- Lane-dense, batch-major layout: carry activations as (F, B) ---
    xt = x.T                                    # (F, B), batch on lanes
    b_lane = pl.cdiv(B, 128) * 128              # lane axis multiple of 128
    bt = b_lane if b_lane <= block_b else block_b
    b_pad = pl.cdiv(b_lane, bt) * bt
    if b_pad != B:
        xt = jnp.pad(xt, ((0, 0), (0, b_pad - B)))
    grid = (b_pad // bt,)

    out_t = pl.pallas_call(
        _fused_affine_kernel,
        out_shape=jax.ShapeDtypeStruct((FEATURES, b_pad), x.dtype),
        grid=grid,
        in_specs=[
            pl.BlockSpec((FEATURES, bt), lambda i: (0, i)),        # activations
            pl.BlockSpec((FEATURES, FEATURES), lambda i: (0, 0)),  # fused W
            pl.BlockSpec((FEATURES, 1), lambda i: (0, 0)),         # fused b
        ],
        out_specs=pl.BlockSpec((FEATURES, bt), lambda i: (0, i)),
        compiler_params=pltpu.CompilerParams(
            dimension_semantics=("parallel",)),
    )(xt, w_total, b_col)

    return out_t[:, :B].T                       # back to (B, F)


def reference(x, weights, biases):
    h = x
    for i in range(NUM_LAYERS):
        h = h @ weights[i].T + biases[i]
    return h


if __name__ == "__main__":
    key = jax.random.PRNGKey(0)
    kx, kw, kb = jax.random.split(key, 3)

    B = 8
    x = jax.random.normal(kx, (B, FEATURES), dtype=jnp.float32)

    # Deterministic parameter init mimicking torch.nn.Linear's
    # uniform(-1/sqrt(fan_in), 1/sqrt(fan_in)) with fan_in = 4.
    bound = 1.0 / jnp.sqrt(jnp.float32(FEATURES))
    weights = jax.random.uniform(
        kw, (NUM_LAYERS, FEATURES, FEATURES), dtype=jnp.float32,
        minval=-bound, maxval=bound)  # (out, in) per layer, PyTorch convention
    biases = jax.random.uniform(
        kb, (NUM_LAYERS, FEATURES), dtype=jnp.float32,
        minval=-bound, maxval=bound)

    out = mlp_chain(x, weights, biases)
    out = jax.block_until_ready(out)

    ref = reference(x, weights, biases)
    assert out.shape == (B, FEATURES)
    # Fusion changes f32 association order slightly; stays well within tol.
    assert jnp.allclose(out, ref, atol=1e-5, rtol=1e-5), "mismatch vs reference"

    print("KERNEL_OK")
</pallas_src>

<mosaic_0001>
module attributes {stable_mosaic.version = 11 : i64} {
  func.func @_fused_affine_kernel(%arg0: i32, %arg1: memref<4x128xf32, #tpu.memory_space<vmem>>, %arg2: memref<4x4xf32, #tpu.memory_space<vmem>>, %arg3: memref<4x1xf32, #tpu.memory_space<vmem>>, %arg4: memref<4x128xf32, #tpu.memory_space<vmem>>) attributes {dimension_semantics = [#tpu.dimension_semantics<parallel>], iteration_bounds = array<i64: 1>, scalar_prefetch = 0 : i64, scratch_operands = 0 : i64, tpu.core_type = #tpu.core_type<tc>, window_params = [{transform_indices = @transform_0, window_bounds = array<i64: 4, 128>}, {pipeline_mode = #tpu.pipeline_mode<synchronous>, transform_indices = @transform_1, window_bounds = array<i64: 4, 4>}, {pipeline_mode = #tpu.pipeline_mode<synchronous>, transform_indices = @transform_2, window_bounds = array<i64: 4, 1>}, {transform_indices = @transform_3, window_bounds = array<i64: 4, 128>}]} {
    %c0 = arith.constant 0 : index
    %c0_0 = arith.constant 0 : index
    %0 = vector.load %arg1[%c0, %c0_0] : memref<4x128xf32, #tpu.memory_space<vmem>>, vector<4x128xf32>
    %c0_1 = arith.constant 0 : index
    %c0_2 = arith.constant 0 : index
    %1 = vector.load %arg2[%c0_1, %c0_2] : memref<4x4xf32, #tpu.memory_space<vmem>>, vector<4x4xf32>
    %c0_3 = arith.constant 0 : index
    %c0_4 = arith.constant 0 : index
    %2 = vector.load %arg3[%c0_3, %c0_4] : memref<4x1xf32, #tpu.memory_space<vmem>>, vector<4x1xf32>
    %3 = vector.shape_cast %2 : vector<4x1xf32> to vector<4x1xf32>
    %4 = vector.broadcast %3 : vector<4x1xf32> to vector<4x128xf32>
    %5 = vector.extract_strided_slice %1 {offsets = [0, 0], sizes = [4, 1], strides = [1, 1]} : vector<4x4xf32> to vector<4x1xf32>
    %6 = vector.extract_strided_slice %0 {offsets = [0, 0], sizes = [1, 128], strides = [1, 1]} : vector<4x128xf32> to vector<1x128xf32>
    %7 = vector.broadcast %5 : vector<4x1xf32> to vector<4x128xf32>
    %8 = vector.broadcast %6 : vector<1x128xf32> to vector<4x128xf32>
    %9 = arith.mulf %7, %8 : vector<4x128xf32>
    %10 = arith.addf %4, %9 : vector<4x128xf32>
    %11 = vector.extract_strided_slice %1 {offsets = [0, 1], sizes = [4, 1], strides = [1, 1]} : vector<4x4xf32> to vector<4x1xf32>
    %12 = vector.extract_strided_slice %0 {offsets = [1, 0], sizes = [1, 128], strides = [1, 1]} : vector<4x128xf32> to vector<1x128xf32>
    %13 = vector.broadcast %11 : vector<4x1xf32> to vector<4x128xf32>
    %14 = vector.broadcast %12 : vector<1x128xf32> to vector<4x128xf32>
    %15 = arith.mulf %13, %14 : vector<4x128xf32>
    %16 = arith.addf %10, %15 : vector<4x128xf32>
    %17 = vector.extract_strided_slice %1 {offsets = [0, 2], sizes = [4, 1], strides = [1, 1]} : vector<4x4xf32> to vector<4x1xf32>
    %18 = vector.extract_strided_slice %0 {offsets = [2, 0], sizes = [1, 128], strides = [1, 1]} : vector<4x128xf32> to vector<1x128xf32>
    %19 = vector.broadcast %17 : vector<4x1xf32> to vector<4x128xf32>
    %20 = vector.broadcast %18 : vector<1x128xf32> to vector<4x128xf32>
    %21 = arith.mulf %19, %20 : vector<4x128xf32>
    %22 = arith.addf %16, %21 : vector<4x128xf32>
    %23 = vector.extract_strided_slice %1 {offsets = [0, 3], sizes = [4, 1], strides = [1, 1]} : vector<4x4xf32> to vector<4x1xf32>
    %24 = vector.extract_strided_slice %0 {offsets = [3, 0], sizes = [1, 128], strides = [1, 1]} : vector<4x128xf32> to vector<1x128xf32>
    %25 = vector.broadcast %23 : vector<4x1xf32> to vector<4x128xf32>
    %26 = vector.broadcast %24 : vector<1x128xf32> to vector<4x128xf32>
    %27 = arith.mulf %25, %26 : vector<4x128xf32>
    %28 = arith.addf %22, %27 : vector<4x128xf32>
    %c0_5 = arith.constant 0 : index
    %c0_6 = arith.constant 0 : index
    %29 = vector.load %arg4[%c0_5, %c0_6] : memref<4x128xf32, #tpu.memory_space<vmem>>, vector<4x128xf32>
    tpu.vector_store %arg4[%c0_5, %c0_6], %28 {strides = array<i32>} : memref<4x128xf32, #tpu.memory_space<vmem>>, vector<4x128xf32>,
    return
  }
  func.func @transform_0(%arg0: i32) -> (i32, i32) {
    %c0_i32 = arith.constant 0 : i32
    %c0_i32_0 = arith.constant 0 : i32
    return %c0_i32, %arg0 : i32, i32
  }
  func.func @transform_1(%arg0: i32) -> (i32, i32) {
    %c0_i32 = arith.constant 0 : i32
    %c0_i32_0 = arith.constant 0 : i32
    %c0_i32_1 = arith.constant 0 : i32
    return %c0_i32, %c0_i32_0 : i32, i32
  }
  func.func @transform_2(%arg0: i32) -> (i32, i32) {
    %c0_i32 = arith.constant 0 : i32
    %c0_i32_0 = arith.constant 0 : i32
    %c0_i32_1 = arith.constant 0 : i32
    return %c0_i32, %c0_i32_0 : i32, i32
  }
  func.func @transform_3(%arg0: i32) -> (i32, i32) {
    %c0_i32 = arith.constant 0 : i32
    %c0_i32_0 = arith.constant 0 : i32
    return %c0_i32, %arg0 : i32, i32
  }
}

</mosaic_0001>

<llo_original>
// kernel: tpu_custom_call.1
$region0: #{tpu_custom_call.1}
  #allocation0 [shape = 'u32[]', space=smem, size = 0x4, offset = 0x4, fixed_abs, tag = 'smem constant byte address 0x4 - core index']
  #allocation1 [shape = 'u32[144,128]{1,0:T(1,128)}', space=vmem, size = 0x12000, scoped, tag = 'internal scratch']
  %s0 = inlined_call_operand.vmem [shape: f32[4,128], index: 0, kind: input, shape index: {}]
  %s1 = inlined_call_operand.hbm [shape: f32[4,4], index: 1, kind: input, shape index: {}]
  %s2 = inlined_call_operand.vmem [shape: f32[4,1], index: 2, kind: input, shape index: {}]
  %s3 = inlined_call_operand.hbm [shape: f32[4,128], index: 3, kind: output, shape index: {}]
  %s4 = sld [smem:[#allocation0]]
  $region26: #{tpu_custom_call.1} parent=0
    _
  %s6 = ssub.s32 1, %s4
  %s7 = scalar_select 0, %s6, %s4
  $region1: #{tpu_custom_call.1} parent=0
    #allocation2 [shape = 'u8[2048]{0}', space=vmem, size = 0x800, scoped, tag = 'input window, operand 1, single buffered']
    #allocation3 [shape = 's32[1]{0}', space=sflag, size = 0x4, scoped, tag = 'scoped memory for tpu_custom_call.1']
    #allocation4 [shape = 's32[1]{0}', space=sflag, size = 0x4, scoped, tag = 'scoped memory for tpu_custom_call.1']
    #allocation5 [shape = 'u8[2048]{0}', space=vmem, size = 0x800, scoped, tag = 'output window, operand 0, single buffered']
    %8 = vsyncpa [#allocation3], 0
    %9 = vsyncpa [#allocation4], 0
    // Predicated region
    $region2: #{tpu_custom_call.1} parent=1 // pred_check
      _
    $region3: #{tpu_custom_call.1} parent=1 // pred_check_branch
      %11 = sbr.rel (0) target = $region5
    $region4: #{tpu_custom_call.1} parent=1 // pred_region
      _
    $region5: #{tpu_custom_call.1} parent=1 // pred_fallthru
      _
    // Predicated region
    $region6: #{tpu_custom_call.1} parent=1 // pred_check
      _
    $region7: #{tpu_custom_call.1} parent=1 // pred_check_branch
      %13 = sbr.rel (0) target = $region9
    $region8: #{tpu_custom_call.1} parent=1 // pred_region
      %s15 = ssub.s32 64, 64
      %16 = vsyncadd [#allocation3], %s15
      %s18 = sshll.u32 [#allocation2], 4
      %s19 = int_to_ptr.vmem [resolvable:$true] %s18
      %21 = dma.hbm_to_vmem [thread:$0]  %s1, 64, %s19, [#allocation3]
    $region9: #{tpu_custom_call.1} parent=1 // pred_fallthru
      _
    // Predicated region
    $region10: #{tpu_custom_call.1} parent=1 // pred_check
      _
    $region11: #{tpu_custom_call.1} parent=1 // pred_check_branch
      %23 = sbr.rel (0) target = $region13
    $region12: #{tpu_custom_call.1} parent=1 // pred_region
      _
    $region13: #{tpu_custom_call.1} parent=1 // pred_fallthru
      _
    // Predicated region
    $region14: #{tpu_custom_call.1} parent=1 // pred_check
      _
    $region15: #{tpu_custom_call.1} parent=1 // pred_check_branch
      %25 = sbr.rel (0) target = $region17
    $region16: #{tpu_custom_call.1} parent=1 // pred_region
      %26 = dma.done [#allocation3], 64
    $region17: #{tpu_custom_call.1} parent=1 // pred_fallthru
      _
    %v27 = vld [vmem:[%s0] sm:$0xf]
    %v28 = vld [vmem:[#allocation2] sm:$0xf]
    %v29 = vld [vmem:[%s2] sm:$0xf]
    %31 = vset.pattern.permute.xlu0 0
    %32 = vperm.xlu0 %31, %v29
    %v33 = vpop.permute.xlu0 %32
    %36 = vset.pattern.permute.xlu0 0
    %37 = vperm.xlu0 %36, %v28
    %v38 = vpop.permute.xlu0 %37
    %v40 = vlaneseq
    %v41 = vshrl.u32 %v40, 7
    %v42 = vsub.s32 0, %v41
    %v43 = vrot.slane %v27, %v42
    %v44 = vmul.f32 %v38, %v43
    %v45 = vadd.f32 %v33, %v44
    %46 = vset.pattern.permute.xlu0 1
    %47 = vperm.xlu0 %46, %v28
    %v48 = vpop.permute.xlu0 %47
    %v50 = vlaneseq
    %v51 = vshrl.u32 %v50, 7
    %v52 = vsub.s32 1, %v51
    %v53 = vrot.slane %v27, %v52
    %v54 = vmul.f32 %v48, %v53
    %v55 = vadd.f32 %v45, %v54
    %56 = vset.pattern.permute.xlu0 2
    %57 = vperm.xlu0 %56, %v28
    %v58 = vpop.permute.xlu0 %57
    %v60 = vlaneseq
    %v61 = vshrl.u32 %v60, 7
    %v62 = vsub.s32 2, %v61
    %v63 = vrot.slane %v27, %v62
    %v64 = vmul.f32 %v58, %v63
    %v65 = vadd.f32 %v55, %v64
    %66 = vset.pattern.permute.xlu0 3
    %67 = vperm.xlu0 %66, %v28
    %v68 = vpop.permute.xlu0 %67
    %v70 = vlaneseq
    %v71 = vshrl.u32 %v70, 7
    %v72 = vsub.s32 3, %v71
    %v73 = vrot.slane %v27, %v72
    %v74 = vmul.f32 %v68, %v73
    %v75 = vadd.f32 %v65, %v74
    %76 = vst [vmem:[#allocation5] sm:$0xf] %v75
    // Predicated region
    $region18: #{tpu_custom_call.1} parent=1 // pred_check
      _
    $region19: #{tpu_custom_call.1} parent=1 // pred_check_branch
      %78 = sbr.rel (0) target = $region21
    $region20: #{tpu_custom_call.1} parent=1 // pred_region
      %s80 = ssub.s32 64, 64
      %81 = vsyncadd [#allocation4], %s80
      %s83 = sshll.u32 [#allocation5], 4
      %s84 = int_to_ptr.vmem [resolvable:$true] %s83
      %86 = dma.vmem_to_hbm [thread:$0]  %s84, 64, %s3, [#allocation4]
    $region21: #{tpu_custom_call.1} parent=1 // pred_fallthru
      _
    // Predicated region
    $region22: #{tpu_custom_call.1} parent=1 // pred_check
      _
    $region23: #{tpu_custom_call.1} parent=1 // pred_check_branch
      %88 = sbr.rel (0) target = $region25
    $region24: #{tpu_custom_call.1} parent=1 // pred_region
      %89 = dma.done [#allocation4], 64
    $region25: #{tpu_custom_call.1} parent=1 // pred_fallthru
      _
    %90 = vsyncpa [#allocation3], 1
    %91 = vsyncpa [#allocation4], 1

</llo_original>
